<compile_context>
chip_gen: v7x
topology: tpu7x:2x2x1
jax: 0.10.0
libtpu: 0.0.40
codegen_flags: <defaults>
</compile_context>

<pallas_src>
import functools

import jax
import jax.numpy as jnp
from jax.experimental import pallas as pl
from jax.experimental.pallas import tpu as pltpu


# ----------------------------------------------------------------------------
# tiling helpers
# ----------------------------------------------------------------------------
def _pick_tile(dim, pref, align):
    """Largest tile <= pref that divides `dim` and is a multiple of `align`;
    falls back to the full dimension (always legal for a BlockSpec)."""
    if dim <= pref:
        return dim
    t = (pref // align) * align
    while t >= align:
        if dim % t == 0:
            return t
        t -= align
    return dim


def _pick_head_block(num_heads, hd, t_s, itemsize, budget_bytes=1024 * 1024):
    """Heads per attention block. Lane width (nh_blk*hd) must be a multiple of
    128 or equal the full hidden size; prefer the largest block that keeps one
    (t_s, nh_blk*hd) tile under budget_bytes (VMEM-friendly on 64 MiB v7x)."""
    for d in range(num_heads, 0, -1):
        if num_heads % d:
            continue
        t_h = d * hd
        if t_h % 128 != 0 and d != num_heads:
            continue
        if t_s * t_h * itemsize <= budget_bytes:
            return d
    return num_heads


# ----------------------------------------------------------------------------
# Tiled linear kernel: out[M, N] = x[M, K] @ w[N, K]^T  (nn.Linear layout)
# ----------------------------------------------------------------------------
def _matmul_kernel(x_ref, w_ref, o_ref, acc_ref):
    @pl.when(pl.program_id(2) == 0)
    def _():
        acc_ref[...] = jnp.zeros_like(acc_ref)

    # contraction on K for both operands -> no in-kernel weight transpose
    acc_ref[...] += jax.lax.dot_general(
        x_ref[...], w_ref[...],
        dimension_numbers=(((1,), (1,)), ((), ())),
        preferred_element_type=jnp.float32)

    @pl.when(pl.program_id(2) == pl.num_programs(2) - 1)
    def _():
        o_ref[...] = acc_ref[...].astype(o_ref.dtype)


def pallas_linear(x, w, out_dtype=jnp.float32, tm=256, tn=256, tk=512):
    """x: [M, K], w: [N, K] (PyTorch nn.Linear weight layout) -> x @ w^T."""
    M, K = x.shape
    N, K2 = w.shape
    assert K == K2
    w = w.astype(x.dtype)
    tm = _pick_tile(M, tm, 8)
    tn = _pick_tile(N, tn, 128)
    tk = _pick_tile(K, tk, 128)
    grid = (M // tm, N // tn, K // tk)
    return pl.pallas_call(
        _matmul_kernel,
        out_shape=jax.ShapeDtypeStruct((M, N), out_dtype),
        grid_spec=pltpu.PrefetchScalarGridSpec(
            num_scalar_prefetch=0,
            grid=grid,
            in_specs=[
                pl.BlockSpec((tm, tk), lambda i, j, k: (i, k)),
                pl.BlockSpec((tn, tk), lambda i, j, k: (j, k)),
            ],
            out_specs=pl.BlockSpec((tm, tn), lambda i, j, k: (i, j)),
            scratch_shapes=[pltpu.VMEM((tm, tn), jnp.float32)],
        ),
        compiler_params=pltpu.CompilerParams(
            dimension_semantics=("parallel", "parallel", "arbitrary")),
    )(x, w)


# ----------------------------------------------------------------------------
# Flash-style causal attention on the [B, S, H] layout (heads = lane slices)
# ----------------------------------------------------------------------------
def _flash_attn_kernel(q_ref, k_ref, v_ref, o_ref, m_ref, l_ref, acc_ref,
                       *, scale, t_q, t_kv, nh_blk, hd):
    qi = pl.program_id(2)
    ki = pl.program_id(3)

    @pl.when(ki == 0)
    def _init():
        m_ref[...] = jnp.full_like(m_ref, -jnp.inf)
        l_ref[...] = jnp.zeros_like(l_ref)
        acc_ref[...] = jnp.zeros_like(acc_ref)

    def _accumulate(apply_mask):
        k_tile = k_ref[0]                                       # [t_kv, nh*hd]
        v_tile = v_ref[0]                                       # [t_kv, nh*hd]
        # fold 1/sqrt(hd) into q (O(t_q*hd) instead of O(t_q*t_kv) scaling)
        q_tile = (q_ref[0].astype(jnp.float32) * scale).astype(k_tile.dtype)

        if apply_mask:
            row = qi * t_q + jax.lax.broadcasted_iota(
                jnp.int32, (t_q, t_kv), 0)
            col = ki * t_kv + jax.lax.broadcasted_iota(
                jnp.int32, (t_q, t_kv), 1)
            causal = col <= row                                 # shared mask

        for h in range(nh_blk):                                 # static unroll
            lo, hi = h * hd, (h + 1) * hd
            qh = q_tile[:, lo:hi]                               # [t_q, hd]
            kh = k_tile[:, lo:hi]                               # [t_kv, hd]
            vh = v_tile[:, lo:hi]                               # [t_kv, hd]

            s = jax.lax.dot_general(
                qh, kh, dimension_numbers=(((1,), (1,)), ((), ())),
                preferred_element_type=jnp.float32)             # [t_q, t_kv]
            if apply_mask:
                s = jnp.where(causal, s, -jnp.inf)

            m_prev = m_ref[h]                                   # [t_q, 1]
            m_new = jnp.maximum(m_prev, jnp.max(s, axis=-1, keepdims=True))
            alpha = jnp.exp(m_prev - m_new)
            p = jnp.exp(s - m_new)
            l_ref[h] = alpha * l_ref[h] + jnp.sum(p, axis=-1, keepdims=True)
            pv = jax.lax.dot_general(
                p.astype(vh.dtype), vh,
                dimension_numbers=(((1,), (0,)), ((), ())),
                preferred_element_type=jnp.float32)             # [t_q, hd]
            acc_ref[h] = alpha * acc_ref[h] + pv
            m_ref[h] = m_new

    # Strictly-below-diagonal KV blocks: fully unmasked fast path.
    @pl.when(ki < qi)
    def _compute_full():
        _accumulate(apply_mask=False)

    # Diagonal block: masked compute, then deferred normalization. KV tiles
    # strictly above the diagonal contribute nothing and are skipped entirely
    # (their DMAs are also elided via the min(ki, qi) index_map below).
    @pl.when(ki == qi)
    def _compute_diag_and_finalize():
        _accumulate(apply_mask=True)
        outs = []
        for h in range(nh_blk):
            inv = pl.reciprocal(l_ref[h], approx=False)         # [t_q, 1]
            outs.append(acc_ref[h] * inv)                       # [t_q, hd]
        o_ref[0] = jnp.concatenate(outs, axis=-1).astype(o_ref.dtype)


def pallas_causal_attention(q, k, v, num_heads, out_dtype=None, t_s=256):
    """q, k, v: [B, S, H] with heads packed as lane slices of size H//num_heads.
    Returns causal attention output in the same [B, S, H] layout."""
    B, S, H = q.shape
    hd = H // num_heads
    out_dtype = out_dtype or q.dtype
    scale = float(hd) ** -0.5

    t_s = _pick_tile(S, t_s, 8)                  # shared q/kv tile (diag logic)
    itemsize = jnp.dtype(q.dtype).itemsize
    nh_blk = _pick_head_block(num_heads, hd, t_s, itemsize)
    t_h = nh_blk * hd
    grid = (B, num_heads // nh_blk, S // t_s, S // t_s)

    q_spec = pl.BlockSpec((1, t_s, t_h), lambda b, h, qi, ki: (b, qi, h))
    # KV blocks above the diagonal are never used; clamp the block index to the
    # diagonal so consecutive iterations see the same index -> no HBM DMA.
    kv_spec = pl.BlockSpec(
        (1, t_s, t_h), lambda b, h, qi, ki: (b, jnp.minimum(ki, qi), h))

    kernel = functools.partial(_flash_attn_kernel, scale=scale, t_q=t_s,
                               t_kv=t_s, nh_blk=nh_blk, hd=hd)
    return pl.pallas_call(
        kernel,
        out_shape=jax.ShapeDtypeStruct((B, S, H), out_dtype),
        grid_spec=pltpu.PrefetchScalarGridSpec(
            num_scalar_prefetch=0,
            grid=grid,
            in_specs=[q_spec, kv_spec, kv_spec],
            out_specs=q_spec,
            scratch_shapes=[
                pltpu.VMEM((nh_blk, t_s, 1), jnp.float32),   # running max
                pltpu.VMEM((nh_blk, t_s, 1), jnp.float32),   # running sum
                pltpu.VMEM((nh_blk, t_s, hd), jnp.float32),  # un-normalized acc
            ],
        ),
        compiler_params=pltpu.CompilerParams(
            dimension_semantics=("parallel", "parallel", "parallel",
                                 "arbitrary")),
    )(q, k, v)


# ----------------------------------------------------------------------------
# Rotary embedding (glue, elementwise, stays in plain JAX)
# ----------------------------------------------------------------------------
def rotary_tables(seq_len, rot_dim):
    """rot_dim = head_dim // 2. Returns sin, cos each [S, rot_dim // 2]."""
    inv_freq = 1.0 / (
        10000.0 ** (jnp.arange(0, rot_dim, 2, dtype=jnp.float32) / rot_dim)
    )
    pos = jnp.arange(seq_len, dtype=jnp.float32)
    sincos = pos[:, None] * inv_freq[None, :]
    return jnp.sin(sincos), jnp.cos(sincos)


def apply_rotary(x, sin, cos):
    """x: [B, S, nh, rot_dim]; sin/cos: [S, rot_dim//2] broadcast over B, nh."""
    rd = x.shape[-1]
    x1, x2 = x[..., : rd // 2], x[..., rd // 2:]
    sin_b = sin[None, :, None, :]
    cos_b = cos[None, :, None, :]
    return jnp.concatenate(
        [x1 * cos_b - x2 * sin_b, x1 * sin_b + x2 * cos_b], axis=-1
    )


# ----------------------------------------------------------------------------
# MultiHeadLatentAttention forward
# ----------------------------------------------------------------------------
def make_params(key, hidden_size, num_heads, compression_ratio=8):
    latent_dim = hidden_size // compression_ratio
    shapes = {
        "kv_proj_d": (latent_dim, hidden_size),
        "q_proj_d": (latent_dim, hidden_size),
        "k_proj_u": (hidden_size // 2, latent_dim),
        "q_proj_u": (hidden_size // 2, latent_dim),
        "v_proj_u": (hidden_size, latent_dim),
        "rope_k": (hidden_size // 2, hidden_size),
        "rope_q": (hidden_size // 2, latent_dim),
        "o_proj": (hidden_size, hidden_size),
    }
    params = {}
    keys = jax.random.split(key, len(shapes))
    for k_, (name, shp) in zip(keys, shapes.items()):
        params[name] = jax.random.normal(k_, shp, jnp.float32) * 0.05
    return params


def mla_forward(params, hidden_states, num_heads, compute_dtype=jnp.bfloat16):
    B, S, H = hidden_states.shape
    hd = H // num_heads
    L = params["kv_proj_d"].shape[0]
    cdt = compute_dtype

    x2d = hidden_states.reshape(B * S, H).astype(cdt)

    # Fused projection weights (concatenated along the output dim).
    w_x = jnp.concatenate(
        [params["kv_proj_d"], params["q_proj_d"], params["rope_k"]], axis=0
    ).astype(cdt)                                            # [2L + H/2, H]
    w_q = jnp.concatenate(
        [params["q_proj_u"], params["rope_q"]], axis=0).astype(cdt)   # [H, L]
    w_kv = jnp.concatenate(
        [params["k_proj_u"], params["v_proj_u"]], axis=0).astype(cdt)  # [3H/2, L]
    w_o = params["o_proj"].astype(cdt)

    # 1) everything that consumes x2d
    xo = pallas_linear(x2d, w_x, out_dtype=cdt)              # [BS, 2L + H/2]
    kv_d = xo[:, :L]
    q_d = xo[:, L:2 * L]
    k_rope_2 = xo[:, 2 * L:].astype(jnp.float32)

    # 2) everything that consumes q_d
    qo = pallas_linear(q_d, w_q, out_dtype=jnp.float32)      # [BS, H]
    q_proj_2 = qo[:, : H // 2]
    q_rope_2 = qo[:, H // 2:]

    # 3) everything that consumes kv_d
    kvo = pallas_linear(kv_d, w_kv, out_dtype=jnp.float32)   # [BS, 3H/2]
    k_proj_2 = kvo[:, : H // 2]
    v_proj = kvo[:, H // 2:]

    # head-split views + rotary (elementwise glue in f32)
    k_proj_2 = k_proj_2.reshape(B, S, num_heads, hd // 2)
    q_proj_2 = q_proj_2.reshape(B, S, num_heads, hd // 2)
    k_rope_2 = k_rope_2.reshape(B, S, num_heads, hd // 2)
    q_rope_2 = q_rope_2.reshape(B, S, num_heads, hd // 2)

    sin, cos = rotary_tables(S, hd // 2)
    q_rope_2 = apply_rotary(q_rope_2, sin, cos)
    k_rope_2 = apply_rotary(k_rope_2, sin, cos)

    q_att = jnp.concatenate([q_proj_2, q_rope_2], axis=-1).reshape(B, S, H)
    k_att = jnp.concatenate([k_proj_2, k_rope_2], axis=-1).reshape(B, S, H)
    v_att = v_proj.reshape(B, S, H)

    # attention directly on the [B, S, H] layout — no HBM transposes
    y = pallas_causal_attention(q_att.astype(cdt), k_att.astype(cdt),
                                v_att.astype(cdt), num_heads, out_dtype=cdt)
    out = pallas_linear(y.reshape(B * S, H), w_o, out_dtype=jnp.float32)
    return out.reshape(B, S, H)


# ----------------------------------------------------------------------------
# Pure-JAX reference (for correctness check)
# ----------------------------------------------------------------------------
def mla_reference(params, hidden_states, num_heads):
    B, S, H = hidden_states.shape
    hd = H // num_heads
    lin = lambda x, w: jnp.einsum("...k,nk->...n", x, w)

    kv_d = lin(hidden_states, params["kv_proj_d"])
    q_d = lin(hidden_states, params["q_proj_d"])
    k_proj_2 = lin(kv_d, params["k_proj_u"]).reshape(B, S, num_heads, hd // 2)
    q_proj_2 = lin(q_d, params["q_proj_u"]).reshape(B, S, num_heads, hd // 2)
    v = lin(kv_d, params["v_proj_u"]).reshape(B, S, num_heads, hd)
    k_rope_2 = lin(hidden_states, params["rope_k"]).reshape(B, S, num_heads, hd // 2)
    q_rope_2 = lin(q_d, params["rope_q"]).reshape(B, S, num_heads, hd // 2)

    sin, cos = rotary_tables(S, hd // 2)
    q_rope_2 = apply_rotary(q_rope_2, sin, cos)
    k_rope_2 = apply_rotary(k_rope_2, sin, cos)

    k = jnp.transpose(jnp.concatenate([k_proj_2, k_rope_2], -1), (0, 2, 1, 3))
    q = jnp.transpose(jnp.concatenate([q_proj_2, q_rope_2], -1), (0, 2, 1, 3))
    v = jnp.transpose(v, (0, 2, 1, 3))

    scale = 1.0 / (hd ** 0.5)
    s = jnp.einsum("bhqd,bhkd->bhqk", q, k) * scale
    mask = jnp.tril(jnp.ones((S, S), bool))
    s = jnp.where(mask[None, None], s, -jnp.inf)
    p = jax.nn.softmax(s, axis=-1)
    y = jnp.einsum("bhqk,bhkd->bhqd", p, v)
    y = jnp.transpose(y, (0, 2, 1, 3)).reshape(B, S, H)
    return lin(y, params["o_proj"])


# ----------------------------------------------------------------------------
if __name__ == "__main__":
    # Small config consistent with the module: hidden=32, heads=4, seq=8
    B, S, H, NH = 2, 8, 32, 4

    key = jax.random.PRNGKey(0)
    k_x, k_p = jax.random.split(key)
    hidden_states = jax.random.normal(k_x, (B, S, H), jnp.float32)
    params = make_params(k_p, H, NH, compression_ratio=8)

    ref = mla_reference(params, hidden_states, NH)

    # 1) exact-semantics check: f32 compute path, tight tolerance
    out_f32 = jax.block_until_ready(
        mla_forward(params, hidden_states, NH, compute_dtype=jnp.float32))
    assert out_f32.shape == (B, S, H)
    assert jnp.allclose(out_f32, ref, atol=2e-4, rtol=2e-4), \
        "f32 Pallas output mismatch vs reference"

    # 2) performance path: bf16 MXU inputs, f32 accumulation (looser tolerance)
    out_bf16 = jax.block_until_ready(
        mla_forward(params, hidden_states, NH, compute_dtype=jnp.bfloat16))
    err = float(jnp.max(jnp.abs(out_bf16 - ref)))
    tol = 0.1 * float(jnp.max(jnp.abs(ref))) + 1e-3
    assert err < tol, f"bf16 Pallas output mismatch vs reference: {err} >= {tol}"

    print("KERNEL_OK")
</pallas_src>

<mosaic_0001>
module attributes {stable_mosaic.version = 11 : i64} {
  func.func @_matmul_kernel(%arg0: i32, %arg1: i32, %arg2: i32, %arg3: memref<16x32xf32, #tpu.memory_space<vmem>>, %arg4: memref<24x32xf32, #tpu.memory_space<vmem>>, %arg5: memref<16x24xf32, #tpu.memory_space<vmem>>, %arg6: memref<16x24xf32, #tpu.memory_space<vmem>>) attributes {dimension_semantics = [#tpu.dimension_semantics<parallel>, #tpu.dimension_semantics<parallel>, #tpu.dimension_semantics<arbitrary>], iteration_bounds = array<i64: 1, 1, 1>, scalar_prefetch = 0 : i64, scratch_operands = 1 : i64, tpu.core_type = #tpu.core_type<tc>, window_params = [{transform_indices = @transform_0, window_bounds = array<i64: 16, 32>}, {transform_indices = @transform_1, window_bounds = array<i64: 24, 32>}, {transform_indices = @transform_2, window_bounds = array<i64: 16, 24>}]} {
    %c0_i32 = arith.constant 0 : i32
    %0 = arith.cmpi eq, %arg2, %c0_i32 : i32
    %1 = arith.extui %0 : i1 to i32
    %c0_i32_0 = arith.constant 0 : i32
    %2 = arith.cmpi ne, %1, %c0_i32_0 : i32
    scf.if %2 {
      %cst_10 = arith.constant 0.000000e+00 : f32
      %12 = vector.broadcast %cst_10 : f32 to vector<16x24xf32>
      %c0_11 = arith.constant 0 : index
      %c0_12 = arith.constant 0 : index
      %13 = vector.load %arg6[%c0_11, %c0_12] : memref<16x24xf32, #tpu.memory_space<vmem>>, vector<16x24xf32>
      tpu.vector_store %arg6[%c0_11, %c0_12], %12 {strides = array<i32>} : memref<16x24xf32, #tpu.memory_space<vmem>>, vector<16x24xf32>,
    } else {
    }
    %c0 = arith.constant 0 : index
    %c0_1 = arith.constant 0 : index
    %3 = vector.load %arg6[%c0, %c0_1] : memref<16x24xf32, #tpu.memory_space<vmem>>, vector<16x24xf32>
    %c0_2 = arith.constant 0 : index
    %c0_3 = arith.constant 0 : index
    %4 = vector.load %arg3[%c0_2, %c0_3] : memref<16x32xf32, #tpu.memory_space<vmem>>, vector<16x32xf32>
    %c0_4 = arith.constant 0 : index
    %c0_5 = arith.constant 0 : index
    %5 = vector.load %arg4[%c0_4, %c0_5] : memref<24x32xf32, #tpu.memory_space<vmem>>, vector<24x32xf32>
    %cst = arith.constant dense<0.000000e+00> : vector<16x24xf32>
    %6 = tpu.matmul %4, %5, %cst {dimension_numbers = #tpu.dot_dimension_numbers<[1], [1], [0], [0], [0, 0, 1, 0], [], []>} : vector<16x32xf32>, vector<24x32xf32>, vector<16x24xf32> -> vector<16x24xf32>
    %7 = arith.addf %3, %6 : vector<16x24xf32>
    %c0_6 = arith.constant 0 : index
    %c0_7 = arith.constant 0 : index
    %8 = vector.load %arg6[%c0_6, %c0_7] : memref<16x24xf32, #tpu.memory_space<vmem>>, vector<16x24xf32>
    tpu.vector_store %arg6[%c0_6, %c0_7], %7 {strides = array<i32>} : memref<16x24xf32, #tpu.memory_space<vmem>>, vector<16x24xf32>,
    %c0_i32_8 = arith.constant 0 : i32
    %9 = arith.cmpi eq, %arg2, %c0_i32_8 : i32
    %10 = arith.extui %9 : i1 to i32
    %c0_i32_9 = arith.constant 0 : i32
    %11 = arith.cmpi ne, %10, %c0_i32_9 : i32
    scf.if %11 {
      %c0_10 = arith.constant 0 : index
      %c0_11 = arith.constant 0 : index
      %12 = vector.load %arg6[%c0_10, %c0_11] : memref<16x24xf32, #tpu.memory_space<vmem>>, vector<16x24xf32>
      %c0_12 = arith.constant 0 : index
      %c0_13 = arith.constant 0 : index
      %13 = vector.load %arg5[%c0_12, %c0_13] : memref<16x24xf32, #tpu.memory_space<vmem>>, vector<16x24xf32>
      tpu.vector_store %arg5[%c0_12, %c0_13], %12 {strides = array<i32>} : memref<16x24xf32, #tpu.memory_space<vmem>>, vector<16x24xf32>,
    } else {
    }
    return
  }
  func.func @transform_0(%arg0: i32, %arg1: i32, %arg2: i32) -> (i32, i32) {
    %c0_i32 = arith.constant 0 : i32
    return %arg0, %arg2 : i32, i32
  }
  func.func @transform_1(%arg0: i32, %arg1: i32, %arg2: i32) -> (i32, i32) {
    %c0_i32 = arith.constant 0 : i32
    return %arg1, %arg2 : i32, i32
  }
  func.func @transform_2(%arg0: i32, %arg1: i32, %arg2: i32) -> (i32, i32) {
    %c0_i32 = arith.constant 0 : i32
    return %arg0, %arg1 : i32, i32
  }
}

</mosaic_0001>

<llo_original>
// kernel: tpu_custom_call.1
$region0: #{tpu_custom_call.1}
  #allocation0 [shape = 'u32[]', space=smem, size = 0x4, offset = 0x4, fixed_abs, tag = 'smem constant byte address 0x4 - core index']
  #allocation1 [shape = 'u32[144,128]{1,0:T(1,128)}', space=vmem, size = 0x12000, scoped, tag = 'internal scratch']
  #allocation2 [shape = 'f32[16,24]{1,0:T(8,128)}', space=vmem, size = 0x2000, scoped, tag = 'scratch operand']
  %s0 = inlined_call_operand.hbm [shape: f32[16,32], index: 0, kind: input, shape index: {}]
  %s1 = inlined_call_operand.hbm [shape: f32[24,32], index: 1, kind: input, shape index: {}]
  %s2 = inlined_call_operand.hbm [shape: f32[16,24], index: 2, kind: output, shape index: {}]
  %s3 = sld [smem:[#allocation0]]
  $region34: #{tpu_custom_call.1} parent=0
    _
  %s5 = ssub.s32 1, %s3
  %s6 = scalar_select 0, %s5, %s3
  $region1: #{tpu_custom_call.1} parent=0
    #allocation3 [shape = 'u8[8192]{0}', space=vmem, size = 0x2000, scoped, tag = 'input window, operand 0, single buffered']
    #allocation4 [shape = 's32[1]{0}', space=sflag, size = 0x4, scoped, tag = 'scoped memory for tpu_custom_call.1']
    #allocation5 [shape = 's32[1]{0}', space=sflag, size = 0x4, scoped, tag = 'scoped memory for tpu_custom_call.1']
    #allocation6 [shape = 'u8[12288]{0}', space=vmem, size = 0x3000, scoped, tag = 'input window, operand 1, single buffered']
    #allocation7 [shape = 's32[1]{0}', space=sflag, size = 0x4, scoped, tag = 'scoped memory for tpu_custom_call.1']
    #allocation8 [shape = 'u8[8192]{0}', space=vmem, size = 0x2000, scoped, tag = 'output window, operand 0, single buffered']
    %7 = vsyncpa [#allocation4], 0
    %8 = vsyncpa [#allocation7], 0
    %9 = vsyncpa [#allocation5], 0
    // Predicated region
    $region2: #{tpu_custom_call.1} parent=1 // pred_check
      _
    $region3: #{tpu_custom_call.1} parent=1 // pred_check_branch
      %11 = sbr.rel (0) target = $region5
    $region4: #{tpu_custom_call.1} parent=1 // pred_region
      %s13 = ssub.s32 256, 256
      %14 = vsyncadd [#allocation4], %s13
      %s15 = sshll.u32 [#allocation3], 4
      %s16 = int_to_ptr.vmem [resolvable:$true] %s15
      %21 = dma.hbm_to_vmem [thread:$0]  %s0, 256, %s16, [#allocation4], 128, 128, 8
    $region5: #{tpu_custom_call.1} parent=1 // pred_fallthru
      _
    // Predicated region
    $region6: #{tpu_custom_call.1} parent=1 // pred_check
      _
    $region7: #{tpu_custom_call.1} parent=1 // pred_check_branch
      %23 = sbr.rel (0) target = $region9
    $region8: #{tpu_custom_call.1} parent=1 // pred_region
      %s25 = ssub.s32 384, 384
      %26 = vsyncadd [#allocation7], %s25
      %s27 = sshll.u32 [#allocation6], 4
      %s28 = int_to_ptr.vmem [resolvable:$true] %s27
      %33 = dma.hbm_to_vmem [thread:$0]  %s1, 384, %s28, [#allocation7], 128, 128, 8
    $region9: #{tpu_custom_call.1} parent=1 // pred_fallthru
      _
    // Predicated region
    $region10: #{tpu_custom_call.1} parent=1 // pred_check
      _
    $region11: #{tpu_custom_call.1} parent=1 // pred_check_branch
      %35 = sbr.rel (0) target = $region13
    $region12: #{tpu_custom_call.1} parent=1 // pred_region
      %36 = dma.done [#allocation4], 256
    $region13: #{tpu_custom_call.1} parent=1 // pred_fallthru
      _
    // Predicated region
    $region14: #{tpu_custom_call.1} parent=1 // pred_check
      _
    $region15: #{tpu_custom_call.1} parent=1 // pred_check_branch
      %38 = sbr.rel (0) target = $region17
    $region16: #{tpu_custom_call.1} parent=1 // pred_region
      %39 = dma.done [#allocation7], 384
    $region17: #{tpu_custom_call.1} parent=1 // pred_fallthru
      _
    %p40 = scmp.eq.s32.totalorder 0, 0
    // Predicated region
    $region18: #{tpu_custom_call.1} parent=1 // pred_check
      %p41 = pneg %p40
    $region19: #{tpu_custom_call.1} parent=1 // pred_check_branch
      %43 = sbr.rel (%p41) target = $region21
    $region20: #{tpu_custom_call.1} parent=1 // pred_region
      %vm44 = vcmask 195584
      %45 = vst.msk [vmem:[#allocation2] sm:$0xff] %vm44, 0.0
      %46 = vst.msk [vmem:[#allocation2 + $0x8] sm:$0xff] %vm44, 0.0
    $region21: #{tpu_custom_call.1} parent=1 // pred_fallthru
      _
    %v47 = vld [vmem:[#allocation2] sm:$0xff]
    %v48 = vld [vmem:[#allocation2 + $0x8] sm:$0xff]
    %v49 = vld [vmem:[#allocation3] sm:$0xff]
    %v50 = vld [vmem:[#allocation3 + $0x8] sm:$0xff]
    %v51 = vld [vmem:[#allocation6] sm:$0xff]
    %v52 = vld [vmem:[#allocation6 + $0x8] sm:$0xff]
    %v53 = vld [vmem:[#allocation6 + $0x10] sm:$0xff]
    %vm54 = vcmask 261120
    %v56 = vsel %vm54, %v49, 0
    %v59 = vsel %vm54, %v50, 0
    %v62 = vsel %vm54, %v51, 0
    %v65 = vsel %vm54, %v52, 0
    %v68 = vsel %vm54, %v53, 0
    %70 = vmatprep.subr.mxu0 0.0
    %71 = vmatpush1.xpose.msra.mxu0 %v62
    %72 = vmatprep.subr.mxu0 0.0
    %73 = vmatpush1.xpose.msra.mxu0 %v65
    %74 = vmatprep.subr.mxu0 0.0
    %75 = vmatpush1.xpose.msra.mxu0 %v68
    %76 = vmatprep.subr.mxu0 0.0
    %77 = vmatpush1.xpose.msra.mxu0 0.0
    %78 = vmatprep.subr.mxu0 0.0
    %79 = vmatpush1.xpose.msra.mxu0 0.0
    %80 = vmatprep.subr.mxu0 0.0
    %81 = vmatpush1.xpose.msra.mxu0 0.0
    %82 = vmatprep.subr.mxu0 0.0
    %83 = vmatpush1.xpose.msra.mxu0 0.0
    %84 = vmatprep.subr.mxu0 0.0
    %85 = vmatpush1.xpose.msra.mxu0 0.0
    %86 = vmatprep.subr.mxu0 0.0
    %87 = vmatpush1.xpose.msra.mxu0 0.0
    %88 = vmatprep.subr.mxu0 0.0
    %89 = vmatpush1.xpose.msra.mxu0 0.0
    %90 = vmatprep.subr.mxu0 0.0
    %91 = vmatpush1.xpose.msra.mxu0 0.0
    %92 = vmatprep.subr.mxu0 0.0
    %93 = vmatpush1.xpose.msra.mxu0 0.0
    %94 = vmatprep.subr.mxu0 0.0
    %95 = vmatpush1.xpose.msra.mxu0 0.0
    %96 = vmatprep.subr.mxu0 0.0
    %97 = vmatpush1.xpose.msra.mxu0 0.0
    %98 = vmatprep.subr.mxu0 0.0
    %99 = vmatpush1.xpose.msra.mxu0 0.0
    %100 = vmatprep.subr.mxu0 0.0
    %101 = vmatpush1.xpose.msra.mxu0 0.0
    %102 = vmatprep.subr.mxu0 0.0
    %103 = vmatpush1.xpose.msra.mxu0 0.0
    %104 = vmatprep.subr.mxu0 0.0
    %105 = vmatpush1.xpose.msra.mxu0 0.0
    %106 = vmatprep.subr.mxu0 0.0
    %107 = vmatpush1.xpose.msra.mxu0 0.0
    %108 = vmatprep.subr.mxu0 0.0
    %109 = vmatpush1.xpose.msra.mxu0 0.0
    %110 = vmatprep.subr.mxu0 0.0
    %111 = vmatpush1.xpose.msra.mxu0 0.0
    %112 = vmatprep.subr.mxu0 0.0
    %113 = vmatpush1.xpose.msra.mxu0 0.0
    %114 = vmatprep.subr.mxu0 0.0
    %115 = vmatpush1.xpose.msra.mxu0 0.0
    %116 = vmatprep.subr.mxu0 0.0
    %117 = vmatpush1.xpose.msra.mxu0 0.0
    %118 = vmatprep.subr.mxu0 0.0
    %119 = vmatpush1.xpose.msra.mxu0 0.0
    %120 = vmatprep.subr.mxu0 0.0
    %121 = vmatpush1.xpose.msra.mxu0 0.0
    %122 = vmatprep.subr.mxu0 0.0
    %123 = vmatpush1.xpose.msra.mxu0 0.0
    %124 = vmatprep.subr.mxu0 0.0
    %125 = vmatpush1.xpose.msra.mxu0 0.0
    %126 = vmatprep.subr.mxu0 0.0
    %127 = vmatpush1.xpose.msra.mxu0 0.0
    %128 = vmatprep.subr.mxu0 0.0
    %129 = vmatpush1.xpose.msra.mxu0 0.0
    %130 = vmatprep.subr.mxu0 0.0
    %131 = vmatpush1.xpose.msra.mxu0 0.0
    %132 = vmatprep.subr.mxu0 0.0
    %133 = vmatpush1.xpose.msra.mxu0 0.0
    %134 = vmatprep.mubr.f32.mxu0 0.0
    %135 = vmatmul.mubr.f32.gmra.mrb[0].mxu0 %v56
    %v136 = vpop.f32.mrb[0].mxu0
    %v137 = vadd.f32 0.0, %v136
    %v138 = vpop.f32.mrb[0].mxu0
    %139 = vmatprep.mubr.f32.mxu0 0.0
    %140 = vmatmul.mubr.f32.gmra.mrb[0].mxu0 %v59
    %v141 = vpop.f32.mrb[0].mxu0
    %v142 = vadd.f32 0.0, %v141
    %v143 = vpop.f32.mrb[0].mxu0
    %144 = vdwg.mxu0
    %v145 = vadd.f32 %v47, %v137
    %v146 = vadd.f32 %v48, %v142
    %vm147 = vcmask 195584
    %148 = vst.msk [vmem:[#allocation2] sm:$0xff] %vm147, %v145
    %149 = vst.msk [vmem:[#allocation2 + $0x8] sm:$0xff] %vm147, %v146
    // Predicated region
    $region22: #{tpu_custom_call.1} parent=1 // pred_check
      %p150 = pneg %p40
    $region23: #{tpu_custom_call.1} parent=1 // pred_check_branch
      %152 = sbr.rel (%p150) target = $region25
    $region24: #{tpu_custom_call.1} parent=1 // pred_region
      %v153 = vld [vmem:[#allocation2] sm:$0xff]
      %v154 = vld [vmem:[#allocation2 + $0x8] sm:$0xff]
      %155 = vst.msk [vmem:[#allocation8] sm:$0xff] %vm147, %v153
      %156 = vst.msk [vmem:[#allocation8 + $0x8] sm:$0xff] %vm147, %v154
    $region25: #{tpu_custom_call.1} parent=1 // pred_fallthru
      _
    // Predicated region
    $region26: #{tpu_custom_call.1} parent=1 // pred_check
      _
    $region27: #{tpu_custom_call.1} parent=1 // pred_check_branch
      %158 = sbr.rel (0) target = $region29
    $region28: #{tpu_custom_call.1} parent=1 // pred_region
      %s160 = ssub.s32 256, 256
      %161 = vsyncadd [#allocation5], %s160
      %s162 = sshll.u32 [#allocation8], 4
      %s163 = int_to_ptr.vmem [resolvable:$true] %s162
      %168 = dma.vmem_to_hbm [thread:$0]  %s163, 256, %s2, [#allocation5], 128, 128, 8
    $region29: #{tpu_custom_call.1} parent=1 // pred_fallthru
      _
    // Predicated region
    $region30: #{tpu_custom_call.1} parent=1 // pred_check
      _
    $region31: #{tpu_custom_call.1} parent=1 // pred_check_branch
      %170 = sbr.rel (0) target = $region33
    $region32: #{tpu_custom_call.1} parent=1 // pred_region
      %171 = dma.done [#allocation5], 256
    $region33: #{tpu_custom_call.1} parent=1 // pred_fallthru
      _
    %172 = vsyncpa [#allocation4], 1
    %173 = vsyncpa [#allocation7], 1
    %174 = vsyncpa [#allocation5], 1

</llo_original>
